<compile_context>
chip_gen: v7x
topology: tpu7x:2x2x1
jax: 0.10.0
libtpu: 0.0.40
codegen_flags: <defaults>
</compile_context>

<pallas_src>
import functools

import jax
import jax.numpy as jnp
from jax import lax
from jax.experimental import pallas as pl
from jax.experimental.pallas import tpu as pltpu


_KV_TILE_MAX = 512  # cap on the key-tile width of the streamed similarity slab


def _kv_tiles(P2):
    """Static (start, size) key tiles covering [0, P2)."""
    tiles, start = [], 0
    while start < P2:
        size = min(_KV_TILE_MAX, P2 - start)
        tiles.append((start, size))
        start += size
    return tiles


# ---------------------------------------------------------------------------
# Pallas kernel: one full row of n2 windows per grid step
# ---------------------------------------------------------------------------
def _pcm_rowwin_kernel(x_ref, v_ref, wt_ref, o_ref, *, p, n, n2):
    """x_ref/v_ref/o_ref: (1, p, n2*p, n); wt_ref: (n, c) = W^T of the 1x1 conv."""
    P2 = p * p
    wt = wt_ref[...]                                               # (n, c) bf16

    # n2 is a small compile-time constant -> static unrolled loop, static slices.
    for i2 in range(n2):
        c0, c1 = i2 * p, (i2 + 1) * p
        x = x_ref[0, :, c0:c1, :].reshape(P2, n)                   # (P2, n) bf16 tokens
        v = v_ref[0, :, c0:c1, :].reshape(P2, n)                   # (P2, n) bf16

        # 1x1-conv projection: q = x @ W^T (bf16 MXU operands, f32 accumulation).
        q = jnp.dot(x, wt, preferred_element_type=jnp.float32)     # (P2, c) f32

        # Per-token L2 normalization (reciprocal + mul, exact).
        norm = jnp.sqrt(jnp.sum(q * q, axis=-1, keepdims=True))
        q = q * pl.reciprocal(norm + 1e-6, approx=False)
        qb = q.astype(jnp.bfloat16)

        # Streamed cosine-similarity attention with deferred row normalization:
        #   s_j    = relu(q @ q_j^T)         (P2, tk)  never a full normalized matrix
        #   denom += rowsum(s_j)             (P2, 1)
        #   acc   += s_j @ v_j               (P2, n)   f32 accumulator
        acc = jnp.zeros((P2, n), jnp.float32)
        denom = jnp.zeros((P2, 1), jnp.float32)
        for k0, tk in _kv_tiles(P2):
            qk = qb[k0:k0 + tk, :]                                 # (tk, c)
            vk = v[k0:k0 + tk, :]                                  # (tk, n)
            s = lax.dot_general(qb, qk, (((1,), (1,)), ((), ())),
                                preferred_element_type=jnp.float32)   # (P2, tk)
            s = jnp.maximum(s, 0.0)
            denom = denom + jnp.sum(s, axis=-1, keepdims=True)
            acc = acc + jnp.dot(s.astype(jnp.bfloat16), vk,
                                preferred_element_type=jnp.float32)

        # Deferred per-row scale applied to the small f32 accumulator (EUP recip).
        out = acc * pl.reciprocal(denom + 1e-6, approx=True)       # (P2, n) f32
        o_ref[0, :, c0:c1, :] = out.reshape(p, p, n).astype(o_ref.dtype)


@functools.lru_cache(maxsize=None)
def _get_pcm_call(bn1, p, w, n, c, n2):
    kernel = functools.partial(_pcm_rowwin_kernel, p=p, n=n, n2=n2)
    row_spec = pl.BlockSpec((1, p, w, n), lambda g: (g, 0, 0, 0))   # contiguous HBM slab

    return pl.pallas_call(
        kernel,
        out_shape=jax.ShapeDtypeStruct((bn1, p, w, n), jnp.bfloat16),
        grid_spec=pltpu.PrefetchScalarGridSpec(
            num_scalar_prefetch=0,
            grid=(bn1,),                                            # 1-D, even megacore split
            in_specs=[
                row_spec,                                           # x row-of-windows (bf16)
                row_spec,                                           # v row-of-windows (bf16)
                # Constant index_map -> weight DMA'd once; double-buffer cost is
                # negligible for small n*c so we keep the default pipelining.
                pl.BlockSpec((n, c), lambda g: (0, 0)),             # W^T (bf16)
            ],
            out_specs=row_spec,
        ),
        compiler_params=pltpu.CompilerParams(
            dimension_semantics=("parallel",),
            vmem_limit_bytes=32 * 1024 * 1024,                      # raise v5e's 16 MiB default
        ),
    )


# ---------------------------------------------------------------------------
# Public entry point (NCHW, PyTorch convention)
# ---------------------------------------------------------------------------
@functools.partial(jax.jit, static_argnames=("window_size",))
def pcm_forward(x, v, w_qk, *, window_size):
    """x, v: (b, n, h, w).  w_qk: (n//2, n, 1, 1) conv weight.  Returns (b, n, h, w) f32."""
    b, n, h, w = x.shape
    p = window_size
    assert h % p == 0 and w % p == 0, "h, w must be multiples of window_size"
    assert p % 8 == 0, "window_size must be a multiple of 8 for TPU sublane alignment"
    c = w_qk.shape[0]
    n1, n2 = h // p, w // p

    x_nhwc = jnp.transpose(x, (0, 2, 3, 1)).astype(jnp.bfloat16)    # channels -> lanes
    v_nhwc = jnp.transpose(v, (0, 2, 3, 1)).astype(jnp.bfloat16)
    # Free reshape: split h into (n1, p) and fold (b, n1) into the 1-D grid axis.
    x_rows = x_nhwc.reshape(b * n1, p, w, n)
    v_rows = v_nhwc.reshape(b * n1, p, w, n)
    wt = jnp.transpose(w_qk.reshape(c, n), (1, 0)).astype(jnp.bfloat16)  # (n, c)

    out_rows = _get_pcm_call(b * n1, p, w, n, c, n2)(x_rows, v_rows, wt)  # bf16
    out_nhwc = out_rows.reshape(b, h, w, n)
    # Back to the module's NCHW / f32 contract (one fused transpose+convert pass).
    return jnp.transpose(out_nhwc, (0, 3, 1, 2)).astype(jnp.float32)


# ---------------------------------------------------------------------------
# Pure-JAX reference (f32) for a correctness sanity check
# ---------------------------------------------------------------------------
def pcm_reference(x, v, w_qk, p):
    b, n, h, w = x.shape
    c = w_qk.shape[0]
    n1, n2 = h // p, w // p
    wt = w_qk.reshape(c, n).T                                       # (n, c)

    def to_tokens(t):
        t = t.reshape(b, n, n1, p, n2, p)
        t = jnp.transpose(t, (0, 2, 4, 3, 5, 1))                    # (b, n1, n2, p1, p2, n)
        return t.reshape(b * n1 * n2, p * p, n)

    xt = to_tokens(x)
    vt = to_tokens(v)
    q = xt @ wt                                                     # (B', P2, c)
    q = q / (jnp.linalg.norm(q, axis=-1, keepdims=True) + 1e-6)
    dots = jnp.einsum('bik,bjk->bij', q, q)
    dots = jnp.maximum(dots, 0.0)
    attn = dots / (jnp.sum(dots, axis=-1, keepdims=True) + 1e-6)
    out = jnp.einsum('bij,bjk->bik', attn, vt)                      # (B', P2, n)
    out = out.reshape(b, n1, n2, p, p, n)
    out = jnp.transpose(out, (0, 5, 1, 3, 2, 4))                    # (b, n, n1, p1, n2, p2)
    return out.reshape(b, n, h, w)


if __name__ == "__main__":
    key = jax.random.PRNGKey(0)
    kx, kv, kw = jax.random.split(key, 3)

    # Small shapes consistent with the module: dim_in=8 channels, 16x16 spatial,
    # window_size=8 (64 tokens per window), batch=2.
    b, dim_in, hgt, wid = 2, 8, 16, 16
    window_size = 8

    x = jax.random.normal(kx, (b, dim_in, hgt, wid), jnp.float32)
    v = jax.random.normal(kv, (b, dim_in, hgt, wid), jnp.float32)
    w_qk = jax.random.normal(kw, (dim_in // 2, dim_in, 1, 1), jnp.float32) * (dim_in ** -0.5)

    out = jax.block_until_ready(pcm_forward(x, v, w_qk, window_size=window_size))
    assert out.shape == (b, dim_in, hgt, wid), out.shape
    assert bool(jnp.all(jnp.isfinite(out)))

    ref = pcm_reference(x, v, w_qk, window_size)
    max_diff = float(jnp.max(jnp.abs(out - ref)))
    # bf16 MXU operands / bf16 output (f32 accumulation) -> ~1e-2 level differences expected.
    assert bool(jnp.allclose(out, ref, atol=1e-1, rtol=1e-1)), max_diff

    print("KERNEL_OK")
</pallas_src>

<mosaic_0001>
module attributes {stable_mosaic.version = 11 : i64} {
  func.func @_pcm_rowwin_kernel(%arg0: i32, %arg1: memref<1x8x16x8xbf16, #tpu.memory_space<vmem>>, %arg2: memref<1x8x16x8xbf16, #tpu.memory_space<vmem>>, %arg3: memref<8x4xbf16, #tpu.memory_space<vmem>>, %arg4: memref<1x8x16x8xbf16, #tpu.memory_space<vmem>>) attributes {dimension_semantics = [#tpu.dimension_semantics<parallel>], iteration_bounds = array<i64: 4>, scalar_prefetch = 0 : i64, scratch_operands = 0 : i64, tpu.core_type = #tpu.core_type<tc>, window_params = [{transform_indices = @transform_0, window_bounds = array<i64: 1, 8, 16, 8>}, {transform_indices = @transform_1, window_bounds = array<i64: 1, 8, 16, 8>}, {pipeline_mode = #tpu.pipeline_mode<synchronous>, transform_indices = @transform_2, window_bounds = array<i64: 8, 4>}, {transform_indices = @transform_3, window_bounds = array<i64: 1, 8, 16, 8>}]} {
    %c0 = arith.constant 0 : index
    %c0_0 = arith.constant 0 : index
    %0 = vector.load %arg3[%c0, %c0_0] : memref<8x4xbf16, #tpu.memory_space<vmem>>, vector<8x4xbf16>
    %c0_1 = arith.constant 0 : index
    %c0_2 = arith.constant 0 : index
    %c0_3 = arith.constant 0 : index
    %c0_4 = arith.constant 0 : index
    %1 = vector.load %arg1[%c0_1, %c0_2, %c0_3, %c0_4] : memref<1x8x16x8xbf16, #tpu.memory_space<vmem>>, vector<1x8x8x8xbf16>
    %2 = vector.shape_cast %1 : vector<1x8x8x8xbf16> to vector<8x8x8xbf16>
    %3 = vector.shape_cast %2 : vector<8x8x8xbf16> to vector<64x8xbf16>
    %c0_5 = arith.constant 0 : index
    %c0_6 = arith.constant 0 : index
    %c0_7 = arith.constant 0 : index
    %c0_8 = arith.constant 0 : index
    %4 = vector.load %arg2[%c0_5, %c0_6, %c0_7, %c0_8] : memref<1x8x16x8xbf16, #tpu.memory_space<vmem>>, vector<1x8x8x8xbf16>
    %5 = vector.shape_cast %4 : vector<1x8x8x8xbf16> to vector<8x8x8xbf16>
    %6 = vector.shape_cast %5 : vector<8x8x8xbf16> to vector<64x8xbf16>
    %cst = arith.constant dense<0.000000e+00> : vector<64x4xf32>
    %7 = tpu.matmul %3, %0, %cst {dimension_numbers = #tpu.dot_dimension_numbers<[1], [0], [0], [1], [0, 0, 1, 1], [], []>} : vector<64x8xbf16>, vector<8x4xbf16>, vector<64x4xf32> -> vector<64x4xf32>
    %8 = arith.mulf %7, %7 : vector<64x4xf32>
    %cst_9 = arith.constant dense<0.000000e+00> : vector<64xf32>
    %9 = vector.multi_reduction <add>, %8, %cst_9 [1] : vector<64x4xf32> to vector<64xf32>
    %10 = vector.shape_cast %9 : vector<64xf32> to vector<64x1xf32>
    %11 = math.sqrt %10 : vector<64x1xf32>
    %cst_10 = arith.constant 9.99999997E-7 : f32
    %12 = vector.broadcast %cst_10 : f32 to vector<64x1xf32>
    %13 = arith.addf %11, %12 : vector<64x1xf32>
    %14 = tpu.reciprocal %13 : vector<64x1xf32> -> vector<64x1xf32>
    %15 = vector.broadcast %14 : vector<64x1xf32> to vector<64x4xf32>
    %16 = arith.mulf %7, %15 : vector<64x4xf32>
    %17 = arith.truncf %16 : vector<64x4xf32> to vector<64x4xbf16>
    %cst_11 = arith.constant 0.000000e+00 : f32
    %18 = vector.broadcast %cst_11 : f32 to vector<64x8xf32>
    %cst_12 = arith.constant 0.000000e+00 : f32
    %19 = vector.broadcast %cst_12 : f32 to vector<64x1xf32>
    %cst_13 = arith.constant dense<0.000000e+00> : vector<64x64xf32>
    %20 = tpu.matmul %17, %17, %cst_13 {dimension_numbers = #tpu.dot_dimension_numbers<[1], [1], [0], [0], [0, 0, 1, 0], [], []>} : vector<64x4xbf16>, vector<64x4xbf16>, vector<64x64xf32> -> vector<64x64xf32>
    %cst_14 = arith.constant 0.000000e+00 : f32
    %21 = vector.broadcast %cst_14 : f32 to vector<64x64xf32>
    %22 = arith.maximumf %20, %21 : vector<64x64xf32>
    %cst_15 = arith.constant dense<0.000000e+00> : vector<64xf32>
    %23 = vector.multi_reduction <add>, %22, %cst_15 [1] : vector<64x64xf32> to vector<64xf32>
    %24 = vector.shape_cast %23 : vector<64xf32> to vector<64x1xf32>
    %25 = arith.addf %19, %24 : vector<64x1xf32>
    %26 = arith.truncf %22 : vector<64x64xf32> to vector<64x64xbf16>
    %cst_16 = arith.constant dense<0.000000e+00> : vector<64x8xf32>
    %27 = tpu.matmul %26, %6, %cst_16 {dimension_numbers = #tpu.dot_dimension_numbers<[1], [0], [0], [1], [0, 0, 1, 1], [], []>} : vector<64x64xbf16>, vector<64x8xbf16>, vector<64x8xf32> -> vector<64x8xf32>
    %28 = arith.addf %18, %27 : vector<64x8xf32>
    %cst_17 = arith.constant 9.99999997E-7 : f32
    %29 = vector.broadcast %cst_17 : f32 to vector<64x1xf32>
    %30 = arith.addf %25, %29 : vector<64x1xf32>
    %31 = tpu.reciprocal %30 {approx = true} : vector<64x1xf32> -> vector<64x1xf32>
    %32 = vector.broadcast %31 : vector<64x1xf32> to vector<64x8xf32>
    %33 = arith.mulf %28, %32 : vector<64x8xf32>
    %34 = vector.shape_cast %33 : vector<64x8xf32> to vector<8x8x8xf32>
    %35 = arith.truncf %34 : vector<8x8x8xf32> to vector<8x8x8xbf16>
    %c0_18 = arith.constant 0 : index
    %c0_19 = arith.constant 0 : index
    %c0_20 = arith.constant 0 : index
    %c0_21 = arith.constant 0 : index
    %36 = vector.load %arg4[%c0_18, %c0_19, %c0_20, %c0_21] : memref<1x8x16x8xbf16, #tpu.memory_space<vmem>>, vector<1x8x8x8xbf16>
    %37 = vector.shape_cast %36 : vector<1x8x8x8xbf16> to vector<8x8x8xbf16>
    %38 = vector.shape_cast %35 : vector<8x8x8xbf16> to vector<1x8x8x8xbf16>
    tpu.vector_store %arg4[%c0_18, %c0_19, %c0_20, %c0_21], %38 {strides = array<i32>} : memref<1x8x16x8xbf16, #tpu.memory_space<vmem>>, vector<1x8x8x8xbf16>,
    %c0_22 = arith.constant 0 : index
    %c0_23 = arith.constant 0 : index
    %c8 = arith.constant 8 : index
    %c0_24 = arith.constant 0 : index
    %39 = vector.load %arg1[%c0_22, %c0_23, %c8, %c0_24] : memref<1x8x16x8xbf16, #tpu.memory_space<vmem>>, vector<1x8x8x8xbf16>
    %40 = vector.shape_cast %39 : vector<1x8x8x8xbf16> to vector<8x8x8xbf16>
    %41 = vector.shape_cast %40 : vector<8x8x8xbf16> to vector<64x8xbf16>
    %c0_25 = arith.constant 0 : index
    %c0_26 = arith.constant 0 : index
    %c8_27 = arith.constant 8 : index
    %c0_28 = arith.constant 0 : index
    %42 = vector.load %arg2[%c0_25, %c0_26, %c8_27, %c0_28] : memref<1x8x16x8xbf16, #tpu.memory_space<vmem>>, vector<1x8x8x8xbf16>
    %43 = vector.shape_cast %42 : vector<1x8x8x8xbf16> to vector<8x8x8xbf16>
    %44 = vector.shape_cast %43 : vector<8x8x8xbf16> to vector<64x8xbf16>
    %cst_29 = arith.constant dense<0.000000e+00> : vector<64x4xf32>
    %45 = tpu.matmul %41, %0, %cst_29 {dimension_numbers = #tpu.dot_dimension_numbers<[1], [0], [0], [1], [0, 0, 1, 1], [], []>} : vector<64x8xbf16>, vector<8x4xbf16>, vector<64x4xf32> -> vector<64x4xf32>
    %46 = arith.mulf %45, %45 : vector<64x4xf32>
    %cst_30 = arith.constant dense<0.000000e+00> : vector<64xf32>
    %47 = vector.multi_reduction <add>, %46, %cst_30 [1] : vector<64x4xf32> to vector<64xf32>
    %48 = vector.shape_cast %47 : vector<64xf32> to vector<64x1xf32>
    %49 = math.sqrt %48 : vector<64x1xf32>
    %cst_31 = arith.constant 9.99999997E-7 : f32
    %50 = vector.broadcast %cst_31 : f32 to vector<64x1xf32>
    %51 = arith.addf %49, %50 : vector<64x1xf32>
    %52 = tpu.reciprocal %51 : vector<64x1xf32> -> vector<64x1xf32>
    %53 = vector.broadcast %52 : vector<64x1xf32> to vector<64x4xf32>
    %54 = arith.mulf %45, %53 : vector<64x4xf32>
    %55 = arith.truncf %54 : vector<64x4xf32> to vector<64x4xbf16>
    %cst_32 = arith.constant 0.000000e+00 : f32
    %56 = vector.broadcast %cst_32 : f32 to vector<64x8xf32>
    %cst_33 = arith.constant 0.000000e+00 : f32
    %57 = vector.broadcast %cst_33 : f32 to vector<64x1xf32>
    %cst_34 = arith.constant dense<0.000000e+00> : vector<64x64xf32>
    %58 = tpu.matmul %55, %55, %cst_34 {dimension_numbers = #tpu.dot_dimension_numbers<[1], [1], [0], [0], [0, 0, 1, 0], [], []>} : vector<64x4xbf16>, vector<64x4xbf16>, vector<64x64xf32> -> vector<64x64xf32>
    %cst_35 = arith.constant 0.000000e+00 : f32
    %59 = vector.broadcast %cst_35 : f32 to vector<64x64xf32>
    %60 = arith.maximumf %58, %59 : vector<64x64xf32>
    %cst_36 = arith.constant dense<0.000000e+00> : vector<64xf32>
    %61 = vector.multi_reduction <add>, %60, %cst_36 [1] : vector<64x64xf32> to vector<64xf32>
    %62 = vector.shape_cast %61 : vector<64xf32> to vector<64x1xf32>
    %63 = arith.addf %57, %62 : vector<64x1xf32>
    %64 = arith.truncf %60 : vector<64x64xf32> to vector<64x64xbf16>
    %cst_37 = arith.constant dense<0.000000e+00> : vector<64x8xf32>
    %65 = tpu.matmul %64, %44, %cst_37 {dimension_numbers = #tpu.dot_dimension_numbers<[1], [0], [0], [1], [0, 0, 1, 1], [], []>} : vector<64x64xbf16>, vector<64x8xbf16>, vector<64x8xf32> -> vector<64x8xf32>
    %66 = arith.addf %56, %65 : vector<64x8xf32>
    %cst_38 = arith.constant 9.99999997E-7 : f32
    %67 = vector.broadcast %cst_38 : f32 to vector<64x1xf32>
    %68 = arith.addf %63, %67 : vector<64x1xf32>
    %69 = tpu.reciprocal %68 {approx = true} : vector<64x1xf32> -> vector<64x1xf32>
    %70 = vector.broadcast %69 : vector<64x1xf32> to vector<64x8xf32>
    %71 = arith.mulf %66, %70 : vector<64x8xf32>
    %72 = vector.shape_cast %71 : vector<64x8xf32> to vector<8x8x8xf32>
    %73 = arith.truncf %72 : vector<8x8x8xf32> to vector<8x8x8xbf16>
    %c0_39 = arith.constant 0 : index
    %c0_40 = arith.constant 0 : index
    %c8_41 = arith.constant 8 : index
    %c0_42 = arith.constant 0 : index
    %74 = vector.load %arg4[%c0_39, %c0_40, %c8_41, %c0_42] : memref<1x8x16x8xbf16, #tpu.memory_space<vmem>>, vector<1x8x8x8xbf16>
    %75 = vector.shape_cast %74 : vector<1x8x8x8xbf16> to vector<8x8x8xbf16>
    %76 = vector.shape_cast %73 : vector<8x8x8xbf16> to vector<1x8x8x8xbf16>
    tpu.vector_store %arg4[%c0_39, %c0_40, %c8_41, %c0_42], %76 {strides = array<i32>} : memref<1x8x16x8xbf16, #tpu.memory_space<vmem>>, vector<1x8x8x8xbf16>,
    return
  }
  func.func @transform_0(%arg0: i32) -> (i32, i32, i32, i32) {
    %c0_i32 = arith.constant 0 : i32
    %c0_i32_0 = arith.constant 0 : i32
    %c0_i32_1 = arith.constant 0 : i32
    %c0_i32_2 = arith.constant 0 : i32
    return %arg0, %c0_i32, %c0_i32_0, %c0_i32_1 : i32, i32, i32, i32
  }
  func.func @transform_1(%arg0: i32) -> (i32, i32, i32, i32) {
    %c0_i32 = arith.constant 0 : i32
    %c0_i32_0 = arith.constant 0 : i32
    %c0_i32_1 = arith.constant 0 : i32
    %c0_i32_2 = arith.constant 0 : i32
    return %arg0, %c0_i32, %c0_i32_0, %c0_i32_1 : i32, i32, i32, i32
  }
  func.func @transform_2(%arg0: i32) -> (i32, i32) {
    %c0_i32 = arith.constant 0 : i32
    %c0_i32_0 = arith.constant 0 : i32
    %c0_i32_1 = arith.constant 0 : i32
    return %c0_i32, %c0_i32_0 : i32, i32
  }
  func.func @transform_3(%arg0: i32) -> (i32, i32, i32, i32) {
    %c0_i32 = arith.constant 0 : i32
    %c0_i32_0 = arith.constant 0 : i32
    %c0_i32_1 = arith.constant 0 : i32
    %c0_i32_2 = arith.constant 0 : i32
    return %arg0, %c0_i32, %c0_i32_0, %c0_i32_1 : i32, i32, i32, i32
  }
}

</mosaic_0001>

<llo_original>
// kernel: pcm_forward.1
$region0: #{pcm_forward.1}
  #allocation0 [shape = 'u32[]', space=smem, size = 0x4, offset = 0x4, fixed_abs, tag = 'smem constant byte address 0x4 - core index']
  #allocation1 [shape = 'u32[144,128]{1,0:T(1,128)}', space=vmem, size = 0x12000, scoped, tag = 'internal scratch']
  %s0 = inlined_call_operand.vmem [shape: bf16[4,8,16,8], index: 0, kind: input, shape index: {}]
  %s1 = inlined_call_operand.vmem [shape: bf16[4,8,16,8], index: 1, kind: input, shape index: {}]
  %s2 = inlined_call_operand.vmem [shape: bf16[8,4], index: 2, kind: input, shape index: {}]
  %s3 = inlined_call_operand.vmem [shape: bf16[4,8,16,8], index: 3, kind: output, shape index: {}]
  %s4 = sld [smem:[#allocation0]]
  $region45: #{pcm_forward.1} parent=0
    _
  %s6 = ssub.s32 1, %s4
  %s7 = scalar_select 0, %s6, %s4
  loop: start=0, step=1, limit=6
  $region2: #{pcm_forward.1} parent=0 // loop_pre_header
    _
  $region3: #{pcm_forward.1} parent=0 // loop_header
    %s9 = sphi 0, %s13
    %p10 = scmp.ge.s32.totalorder %s9, 6
    %s19 = sphi 0, %s21
    %s22 = sphi 0, %s19
    %s23 = sphi 0, %s22
    %s39 = sphi 0, %s23
    %s45 = sphi 0, %s47
    %s48 = sphi 0, %s45
    %s49 = sphi 0, %s48
    %s65 = sphi 0, %s49
    %s69 = sphi 0, %s69
    %s71 = sphi 0, %s69
    %s72 = sphi 0, %s71
    %s86 = sphi 0, %s72
    %s92 = sphi 0, %s94
    %s95 = sphi 0, %s92
    %s96 = sphi 0, %s95
    %s112 = sphi 0, %s96
  $region4: #{pcm_forward.1} parent=0 // loop_header_branch
    %12 = sbr.rel (%p10) target = $region8
  $region5: #{pcm_forward.1} parent=0 // loop_body
    %s14 = ssub.s32 %s9, 1
    %s15 = ssub.s32 %s9, 2
    %s16 = sadd.s32 %s9, 1
    %s17 = ssub.s32 %s9, %s16
    %p18 = scmp.eq.s32.totalorder %s17, 0
    %s20 = sadd.s32 %s19, 1
    %s21 = scalar_select %p18, %s19, %s20
    %p24 = pneg %p18
    %p25 = scmp.eq.s32.totalorder %s9, 3
    %p26 = por %p24, %p25
    %p27 = scmp.ne.s32.totalorder %s19, %s22
    %p28 = scmp.eq.s32.totalorder %s9, 0
    %p29 = por %p27, %p28
    %p30 = scmp.ne.s32.totalorder %s19, %s22
    %p31 = scmp.eq.s32.totalorder %s14, 3
    %p32 = por %p30, %p31
    %p33 = scmp.ne.s32.totalorder %s22, %s23
    %p34 = scmp.eq.s32.totalorder %s14, 0
    %p35 = por %p33, %p34
    %p36 = scmp.ne.s32.totalorder %s22, %s23
    %p37 = scmp.eq.s32.totalorder %s15, 3
    %p38 = por %p36, %p37
    %p40 = scmp.ne.s32.totalorder %s23, %s39
    %p41 = scmp.eq.s32.totalorder %s15, 0
    %p42 = por %p40, %p41
    %s43 = ssub.s32 %s9, %s16
    %p44 = scmp.eq.s32.totalorder %s43, 0
    %s46 = sadd.s32 %s45, 1
    %s47 = scalar_select %p44, %s45, %s46
    %p50 = pneg %p44
    %p51 = scmp.eq.s32.totalorder %s9, 3
    %p52 = por %p50, %p51
    %p53 = scmp.ne.s32.totalorder %s45, %s48
    %p54 = scmp.eq.s32.totalorder %s9, 0
    %p55 = por %p53, %p54
    %p56 = scmp.ne.s32.totalorder %s45, %s48
    %p57 = scmp.eq.s32.totalorder %s14, 3
    %p58 = por %p56, %p57
    %p59 = scmp.ne.s32.totalorder %s48, %s49
    %p60 = scmp.eq.s32.totalorder %s14, 0
    %p61 = por %p59, %p60
    %p62 = scmp.ne.s32.totalorder %s48, %s49
    %p63 = scmp.eq.s32.totalorder %s15, 3
    %p64 = por %p62, %p63
    %p66 = scmp.ne.s32.totalorder %s49, %s65
    %p67 = scmp.eq.s32.totalorder %s15, 0
    %p68 = por %p66, %p67
    %s70 = sadd.s32 %s69, 1
    %p73 = scmp.eq.s32.totalorder %s9, 3
    %p74 = scmp.ne.s32.totalorder %s69, %s71
    %p75 = scmp.eq.s32.totalorder %s9, 0
    %p76 = por %p74, %p75
    %p77 = scmp.ne.s32.totalorder %s69, %s71
    %p78 = scmp.eq.s32.totalorder %s14, 3
    %p79 = por %p77, %p78
    %p80 = scmp.ne.s32.totalorder %s71, %s72
    %p81 = scmp.eq.s32.totalorder %s14, 0
    %p82 = por %p80, %p81
    %p83 = scmp.ne.s32.totalorder %s71, %s72
    %p84 = scmp.eq.s32.totalorder %s15, 3
    %p85 = por %p83, %p84
    %p87 = scmp.ne.s32.totalorder %s72, %s86
    %p88 = scmp.eq.s32.totalorder %s15, 0
    %p89 = por %p87, %p88
    %s90 = ssub.s32 %s9, %s16
    %p91 = scmp.eq.s32.totalorder %s90, 0
    %s93 = sadd.s32 %s92, 1
    %s94 = scalar_select %p91, %s92, %s93
    %p97 = pneg %p91
    %p98 = scmp.eq.s32.totalorder %s9, 3
    %p99 = por %p97, %p98
    %p100 = scmp.ne.s32.totalorder %s92, %s95
    %p101 = scmp.eq.s32.totalorder %s9, 0
    %p102 = por %p100, %p101
    %p103 = scmp.ne.s32.totalorder %s92, %s95
    %p104 = scmp.eq.s32.totalorder %s14, 3
    %p105 = por %p103, %p104
    %p106 = scmp.ne.s32.totalorder %s95, %s96
    %p107 = scmp.eq.s32.totalorder %s14, 0
    %p108 = por %p106, %p107
    %p109 = scmp.ne.s32.totalorder %s95, %s96
    %p110 = scmp.eq.s32.totalorder %s15, 3
    %p111 = por %p109, %p110
    %p113 = scmp.ne.s32.totalorder %s96, %s112
    %p114 = scmp.eq.s32.totalorder %s15, 0
    %p115 = por %p113, %p114
    %p116 = scmp.le.s32.totalorder 1, %s9
    %p117 = scmp.lt.s32.totalorder %s9, 5
    %p118 = pnand %p116, %p117
    %p119 = pneg %p118
    // Predicated region
    $region9: #{pcm_forward.1} parent=5 // pred_check
      _
    $region10: #{pcm_forward.1} parent=5 // pred_check_branch
      %121 = sbr.rel (%p118) target = $region12
    $region11: #{pcm_forward.1} parent=5 // pred_region
      %s122 = ssub.s32 %s9, 1
      // Predicated region
      $region13: #{pcm_forward.1} parent=11 // pred_check
        %p123 = pneg %p82
      $region14: #{pcm_forward.1} parent=11 // pred_check_branch
        %125 = sbr.rel (%p123) target = $region16
      $region15: #{pcm_forward.1} parent=11 // pred_region
        _
      $region16: #{pcm_forward.1} parent=11 // pred_fallthru
        _
    $region12: #{pcm_forward.1} parent=5 // pred_fallthru
      _
    %p126 = scmp.lt.s32.totalorder %s9, 4
    // Predicated region
    $region17: #{pcm_forward.1} parent=5 // pred_check
      %p127 = pneg %p126
    $region18: #{pcm_forward.1} parent=5 // pred_check_branch
      %129 = sbr.rel (%p127) target = $region20
    $region19: #{pcm_forward.1} parent=5 // pred_region
      // Predicated region
      $region21: #{pcm_forward.1} parent=19 // pred_check
        %p130 = pneg %p29
      $region22: #{pcm_forward.1} parent=19 // pred_check_branch
        %132 = sbr.rel (%p130) target = $region24
      $region23: #{pcm_forward.1} parent=19 // pred_region
        %p133 = scmp.lt.s32.totalorder %s9, 3
        %s134 = scalar_select %p133, %s9, 3
        %s135 = smul.addr %s134, 16
        %s136 = smul.addr %s135, 4
        %s137 = scalar_lea.vmem %s0, %s136
      $region24: #{pcm_forward.1} parent=19 // pred_fallthru
        _
      // Predicated region
      $region25: #{pcm_forward.1} parent=19 // pred_check
        %p138 = pneg %p55
      $region26: #{pcm_forward.1} parent=19 // pred_check_branch
        %140 = sbr.rel (%p138) target = $region28
      $region27: #{pcm_forward.1} parent=19 // pred_region
        %p141 = scmp.lt.s32.totalorder %s9, 3
        %s142 = scalar_select %p141, %s9, 3
        %s143 = smul.addr %s142, 16
        %s144 = smul.addr %s143, 4
        %s145 = scalar_lea.vmem %s1, %s144
      $region28: #{pcm_forward.1} parent=19 // pred_fallthru
        _
    $region20: #{pcm_forward.1} parent=5 // pred_fallthru
      _
    %p146 = scmp.le.s32.totalorder 1, %s9
    %p147 = scmp.lt.s32.totalorder %s9, 5
    %p148 = pnand %p146, %p147
    %p149 = pneg %p148
    // Predicated region
    $region29: #{pcm_forward.1} parent=5 // pred_check
      _
    $region30: #{pcm_forward.1} parent=5 // pred_check_branch
      %151 = sbr.rel (%p148) target = $region32
    $region31: #{pcm_forward.1} parent=5 // pred_region
      %s152 = ssub.s32 %s9, 1
      %p153 = scmp.lt.s32.totalorder %s14, 3
      %s154 = scalar_select %p153, %s14, 3
      %s155 = smul.addr %s154, 16
      %s156 = smul.addr %s155, 4
      %s157 = scalar_lea.vmem %s0, %s156
      %p158 = pneg %p35
      %p159 = pneg %p32
      %p160 = scmp.lt.s32.totalorder %s14, 3
      %s161 = scalar_select %p160, %s14, 3
      %s162 = smul.addr %s161, 16
      %s163 = smul.addr %s162, 4
      %s164 = scalar_lea.vmem %s1, %s163
      %p165 = pneg %p61
      %p166 = pneg %p58
      %p167 = pneg %p82
      %p168 = pneg %p79
      %p169 = pneg %p108
      %p170 = pneg %p105
      %p171 = scmp.lt.s32.totalorder %s14, 3
      %s172 = scalar_select %p171, %s14, 3
      %s173 = smul.addr %s172, 16
      %s174 = smul.addr %s173, 4
      %s175 = scalar_lea.vmem %s3, %s174
      %p176 = scmp.lt.s32.totalorder %s14, 3
      %s177 = scalar_select %p176, %s14, 3
      %s178 = smul.addr %s177, 16
      %s179 = smul.addr %s178, 4
      %s180 = scalar_lea.vmem %s0, %s179
      %p181 = scmp.lt.s32.totalorder %s14, 3
      %s182 = scalar_select %p181, %s14, 3
      %s183 = smul.addr %s182, 16
      %s184 = smul.addr %s183, 4
      %s185 = scalar_lea.vmem %s1, %s184
      %p186 = scmp.lt.s32.totalorder %s14, 3
      %s187 = scalar_select %p186, %s14, 3
      %s188 = smul.addr %s187, 16
      %s189 = smul.addr %s188, 4
      %s190 = scalar_lea.vmem %s3, %s189
      %v192 = vld [vmem:[%s2] sm:$0xf]
      %v193 = vld [vmem:[%s180] sm:$0xf]
      %v194 = vld [vmem:[%s180 + $0x8] sm:$0xf]
      %v195 = vld [vmem:[%s180 + $0x10] sm:$0xf]
      %v196 = vld [vmem:[%s180 + $0x18] sm:$0xf]
      %v197 = vld [vmem:[%s180 + $0x20] sm:$0xf]
      %v198 = vld [vmem:[%s180 + $0x28] sm:$0xf]
      %v199 = vld [vmem:[%s180 + $0x30] sm:$0xf]
      %v200 = vld [vmem:[%s180 + $0x38] sm:$0xf]
      %v201 = vld [vmem:[%s185] sm:$0xf]
      %v202 = vld [vmem:[%s185 + $0x8] sm:$0xf]
      %v203 = vld [vmem:[%s185 + $0x10] sm:$0xf]
      %v204 = vld [vmem:[%s185 + $0x18] sm:$0xf]
      %v205 = vld [vmem:[%s185 + $0x20] sm:$0xf]
      %v206 = vld [vmem:[%s185 + $0x28] sm:$0xf]
      %v207 = vld [vmem:[%s185 + $0x30] sm:$0xf]
      %v208 = vld [vmem:[%s185 + $0x38] sm:$0xf]
      %v217 = vunpack.c.l.b16 %v193
      %v218 = vunpack.c.l.b16 %v194
      %v219 = vunpack.c.l.b16 %v195
      %v220 = vunpack.c.l.b16 %v196
      %v221 = vunpack.c.l.b16 %v197
      %v222 = vunpack.c.l.b16 %v198
      %v223 = vunpack.c.l.b16 %v199
      %v224 = vunpack.c.l.b16 %v200
      %v225 = vpack.c.b16 %v218, %v217
      %v226 = vpack.c.b16 %v220, %v219
      %v227 = vpack.c.b16 %v222, %v221
      %v228 = vpack.c.b16 %v224, %v223
      %vm229 = vcmask 64512
      %v231 = vsel %vm229, %v225, 0
      %v234 = vsel %vm229, %v226, 0
      %v237 = vsel %vm229, %v227, 0
      %v240 = vsel %vm229, %v228, 0
      %vm242 = vcmask 1043456
      %v244 = vsel %vm242, %v192, 0
      %246 = vmatprep.subr.bf16.mxu0 0
      %247 = vmatpush1.bf16.msra.mxu0 %v244
      %248 = vmatprep.subr.bf16.mxu0 0
      %249 = vmatpush1.bf16.msra.mxu0 0
      %250 = vmatprep.subr.bf16.mxu0 0
      %251 = vmatpush1.bf16.msra.mxu0 0
      %252 = vmatprep.subr.bf16.mxu0 0
      %253 = vmatpush1.bf16.msra.mxu0 0
      %254 = vmatprep.subr.bf16.mxu0 0
      %255 = vmatpush1.bf16.msra.mxu0 0
      %256 = vmatprep.subr.bf16.mxu0 0
      %257 = vmatpush1.bf16.msra.mxu0 0
      %258 = vmatprep.subr.bf16.mxu0 0
      %259 = vmatpush1.bf16.msra.mxu0 0
      %260 = vmatprep.subr.bf16.mxu0 0
      %261 = vmatpush1.bf16.msra.mxu0 0
      %262 = vmatprep.subr.bf16.mxu0 0
      %263 = vmatpush1.bf16.msra.mxu0 0
      %264 = vmatprep.subr.bf16.mxu0 0
      %265 = vmatpush1.bf16.msra.mxu0 0
      %266 = vmatprep.subr.bf16.mxu0 0
      %267 = vmatpush1.bf16.msra.mxu0 0
      %268 = vmatprep.subr.bf16.mxu0 0
      %269 = vmatpush1.bf16.msra.mxu0 0
      %270 = vmatprep.subr.bf16.mxu0 0
      %271 = vmatpush1.bf16.msra.mxu0 0
      %272 = vmatprep.subr.bf16.mxu0 0
      %273 = vmatpush1.bf16.msra.mxu0 0
      %274 = vmatprep.subr.bf16.mxu0 0
      %275 = vmatpush1.bf16.msra.mxu0 0
      %276 = vmatprep.subr.bf16.mxu0 0
      %277 = vmatpush1.bf16.msra.mxu0 0
      %278 = vmatprep.mubr.bf16.mxu0 0
      %279 = vmatmul.mubr.bf16.gmra.mrb[0].mxu0 %v231
      %v280 = vpop.f32.mrb[0].mxu0
      %v281 = vadd.f32 0.0, %v280
      %v282 = vpop.f32.mrb[0].mxu0
      %v283 = vpop.f32.mrb[0].mxu0
      %v284 = vadd.f32 0.0, %v283
      %v285 = vpop.f32.mrb[0].mxu0
      %286 = vmatprep.mubr.bf16.mxu0 0
      %287 = vmatmul.mubr.bf16.gmra.mrb[0].mxu0 %v234
      %v288 = vpop.f32.mrb[0].mxu0
      %v289 = vadd.f32 0.0, %v288
      %v290 = vpop.f32.mrb[0].mxu0
      %v291 = vpop.f32.mrb[0].mxu0
      %v292 = vadd.f32 0.0, %v291
      %v293 = vpop.f32.mrb[0].mxu0
      %294 = vmatprep.mubr.bf16.mxu0 0
      %295 = vmatmul.mubr.bf16.gmra.mrb[0].mxu0 %v237
      %v296 = vpop.f32.mrb[0].mxu0
      %v297 = vadd.f32 0.0, %v296
      %v298 = vpop.f32.mrb[0].mxu0
      %v299 = vpop.f32.mrb[0].mxu0
      %v300 = vadd.f32 0.0, %v299
      %v301 = vpop.f32.mrb[0].mxu0
      %302 = vmatprep.mubr.bf16.mxu0 0
      %303 = vmatmul.mubr.bf16.gmra.mrb[0].mxu0 %v240
      %v304 = vpop.f32.mrb[0].mxu0
      %v305 = vadd.f32 0.0, %v304
      %v306 = vpop.f32.mrb[0].mxu0
      %v307 = vpop.f32.mrb[0].mxu0
      %v308 = vadd.f32 0.0, %v307
      %v309 = vpop.f32.mrb[0].mxu0
      %310 = vdwg.mxu0
      %v311 = vmul.f32 %v281, %v281
      %v312 = vmul.f32 %v284, %v284
      %v313 = vmul.f32 %v289, %v289
      %v314 = vmul.f32 %v292, %v292
      %v315 = vmul.f32 %v297, %v297
      %v316 = vmul.f32 %v300, %v300
      %v317 = vmul.f32 %v305, %v305
      %v318 = vmul.f32 %v308, %v308
      %vm319 = vcmask 31744
      %v320 = vsel %vm319, %v311, 0.0
      %321 = vadd.xlane.f32.xlu0 %v320
      %v322 = vpop.xlane.xlu0 %321
      %v323 = vsel %vm319, %v312, 0.0
      %324 = vadd.xlane.f32.xlu0 %v323
      %v325 = vpop.xlane.xlu0 %324
      %v326 = vsel %vm319, %v313, 0.0
      %327 = vadd.xlane.f32.xlu0 %v326
      %v328 = vpop.xlane.xlu0 %327
      %v329 = vsel %vm319, %v314, 0.0
      %330 = vadd.xlane.f32.xlu0 %v329
      %v331 = vpop.xlane.xlu0 %330
      %v332 = vsel %vm319, %v315, 0.0
      %333 = vadd.xlane.f32.xlu0 %v332
      %v334 = vpop.xlane.xlu0 %333
      %v335 = vsel %vm319, %v316, 0.0
      %336 = vadd.xlane.f32.xlu0 %v335
      %v337 = vpop.xlane.xlu0 %336
      %v338 = vsel %vm319, %v317, 0.0
      %339 = vadd.xlane.f32.xlu0 %v338
      %v340 = vpop.xlane.xlu0 %339
      %v341 = vsel %vm319, %v318, 0.0
      %342 = vadd.xlane.f32.xlu0 %v341
      %v343 = vpop.xlane.xlu0 %342
      %v344 = vrsqrt.pop %v322
      %v345 = vmul.f32 %v322, %v344
      %vm346 = vcmp.eq.f32.partialorder %v322, inf
      %v347 = vsel %vm346, %v322, %v345
      %vm348 = vcmp.eq.f32.partialorder %v322, 0.0
      %v349 = vand.u32 %v322, 2147483648
      %v350 = vsel %vm348, %v349, %v347
      %v351 = vrsqrt.pop %v325
      %v352 = vmul.f32 %v325, %v351
      %vm353 = vcmp.eq.f32.partialorder %v325, inf
      %v354 = vsel %vm353, %v325, %v352
      %vm355 = vcmp.eq.f32.partialorder %v325, 0.0
      %v356 = vand.u32 %v325, 2147483648
      %v357 = vsel %vm355, %v356, %v354
      %v358 = vrsqrt.pop %v328
      %v359 = vmul.f32 %v328, %v358
      %vm360 = vcmp.eq.f32.partialorder %v328, inf
      %v361 = vsel %vm360, %v328, %v359
      %vm362 = vcmp.eq.f32.partialorder %v328, 0.0
      %v363 = vand.u32 %v328, 2147483648
      %v364 = vsel %vm362, %v363, %v361
      %v365 = vrsqrt.pop %v331
      %v366 = vmul.f32 %v331, %v365
      %vm367 = vcmp.eq.f32.partialorder %v331, inf
      %v368 = vsel %vm367, %v331, %v366
      %vm369 = vcmp.eq.f32.partialorder %v331, 0.0
      %v370 = vand.u32 %v331, 2147483648
      %v371 = vsel %vm369, %v370, %v368
      %v372 = vrsqrt.pop %v334
      %v373 = vmul.f32 %v334, %v372
      %vm374 = vcmp.eq.f32.partialorder %v334, inf
      %v375 = vsel %vm374, %v334, %v373
      %vm376 = vcmp.eq.f32.partialorder %v334, 0.0
      %v377 = vand.u32 %v334, 2147483648
      %v378 = vsel %vm376, %v377, %v375
      %v379 = vrsqrt.pop %v337
      %v380 = vmul.f32 %v337, %v379
      %vm381 = vcmp.eq.f32.partialorder %v337, inf
      %v382 = vsel %vm381, %v337, %v380
      %vm383 = vcmp.eq.f32.partialorder %v337, 0.0
      %v384 = vand.u32 %v337, 2147483648
      %v385 = vsel %vm383, %v384, %v382
      %v386 = vrsqrt.pop %v340
      %v387 = vmul.f32 %v340, %v386
      %vm388 = vcmp.eq.f32.partialorder %v340, inf
      %v389 = vsel %vm388, %v340, %v387
      %vm390 = vcmp.eq.f32.partialorder %v340, 0.0
      %v391 = vand.u32 %v340, 2147483648
      %v392 = vsel %vm390, %v391, %v389
      %v393 = vrsqrt.pop %v343
      %v394 = vmul.f32 %v343, %v393
      %vm395 = vcmp.eq.f32.partialorder %v343, inf
      %v396 = vsel %vm395, %v343, %v394
      %vm397 = vcmp.eq.f32.partialorder %v343, 0.0
      %v398 = vand.u32 %v343, 2147483648
      %v399 = vsel %vm397, %v398, %v396
      %v400 = vadd.f32 %v350, 1e-06
      %v401 = vadd.f32 %v357, 1e-06
      %v402 = vadd.f32 %v364, 1e-06
      %v403 = vadd.f32 %v371, 1e-06
      %v404 = vadd.f32 %v378, 1e-06
      %v405 = vadd.f32 %v385, 1e-06
      %v406 = vadd.f32 %v392, 1e-06
      %v407 = vadd.f32 %v399, 1e-06
      %v408 = vrcp.pop %v400
      %v409 = vrcp.pop %v401
      %v410 = vrcp.pop %v402
      %v411 = vrcp.pop %v403
      %v412 = vrcp.pop %v404
      %v413 = vrcp.pop %v405
      %v414 = vrcp.pop %v406
      %v415 = vrcp.pop %v407
      %v416 = vmul.f32 %v281, %v408
      %v417 = vmul.f32 %v284, %v409
      %v418 = vmul.f32 %v289, %v410
      %v419 = vmul.f32 %v292, %v411
      %v420 = vmul.f32 %v297, %v412
      %v421 = vmul.f32 %v300, %v413
      %v422 = vmul.f32 %v305, %v414
      %v423 = vmul.f32 %v308, %v415
      %v424 = vpack.c.bf16 %v417, %v416
      %v425 = vpack.c.bf16 %v419, %v418
      %v426 = vpack.c.bf16 %v421, %v420
      %v427 = vpack.c.bf16 %v423, %v422
      %v429 = vsel %vm319, %v424, 0
      %v432 = vsel %vm319, %v425, 0
      %v435 = vsel %vm319, %v426, 0
      %v438 = vsel %vm319, %v427, 0
      %440 = vmatprep.subr.bf16.mxu0 0
      %441 = vmatpush1.bf16.xpose.msra.mxu0 %v429
      %442 = vmatprep.subr.bf16.mxu0 0
      %443 = vmatpush1.bf16.xpose.msra.mxu0 %v432
      %444 = vmatprep.subr.bf16.mxu0 0
      %445 = vmatpush1.bf16.xpose.msra.mxu0 %v435
      %446 = vmatprep.subr.bf16.mxu0 0
      %447 = vmatpush1.bf16.xpose.msra.mxu0 %v438
      %448 = vmatprep.subr.bf16.mxu0 0
      %449 = vmatpush1.bf16.xpose.msra.mxu0 0
      %450 = vmatprep.subr.bf16.mxu0 0
      %451 = vmatpush1.bf16.xpose.msra.mxu0 0
      %452 = vmatprep.subr.bf16.mxu0 0
      %453 = vmatpush1.bf16.xpose.msra.mxu0 0
      %454 = vmatprep.subr.bf16.mxu0 0
      %455 = vmatpush1.bf16.xpose.msra.mxu0 0
      %456 = vmatprep.subr.bf16.mxu0 0
      %457 = vmatpush1.bf16.xpose.msra.mxu0 0
      %458 = vmatprep.subr.bf16.mxu0 0
      %459 = vmatpush1.bf16.xpose.msra.mxu0 0
      %460 = vmatprep.subr.bf16.mxu0 0
      %461 = vmatpush1.bf16.xpose.msra.mxu0 0
      %462 = vmatprep.subr.bf16.mxu0 0
      %463 = vmatpush1.bf16.xpose.msra.mxu0 0
      %464 = vmatprep.subr.bf16.mxu0 0
      %465 = vmatpush1.bf16.xpose.msra.mxu0 0
      %466 = vmatprep.subr.bf16.mxu0 0
      %467 = vmatpush1.bf16.xpose.msra.mxu0 0
      %468 = vmatprep.subr.bf16.mxu0 0
      %469 = vmatpush1.bf16.xpose.msra.mxu0 0
      %470 = vmatprep.subr.bf16.mxu0 0
      %471 = vmatpush1.bf16.xpose.msra.mxu0 0
      %472 = vmatprep.mubr.bf16.mxu0 0
      %473 = vmatmul.mubr.bf16.gmra.mrb[0].mxu0 %v429
      %v474 = vpop.f32.mrb[0].mxu0
      %v475 = vadd.f32 0.0, %v474
      %v476 = vpop.f32.mrb[0].mxu0
      %v477 = vpop.f32.mrb[0].mxu0
      %v478 = vadd.f32 0.0, %v477
      %v479 = vpop.f32.mrb[0].mxu0
      %480 = vmatprep.mubr.bf16.mxu0 0
      %481 = vmatmul.mubr.bf16.gmra.mrb[0].mxu0 %v432
      %v482 = vpop.f32.mrb[0].mxu0
      %v483 = vadd.f32 0.0, %v482
      %v484 = vpop.f32.mrb[0].mxu0
      %v485 = vpop.f32.mrb[0].mxu0
      %v486 = vadd.f32 0.0, %v485
      %v487 = vpop.f32.mrb[0].mxu0
      %488 = vmatprep.mubr.bf16.mxu0 0
      %489 = vmatmul.mubr.bf16.gmra.mrb[0].mxu0 %v435
      %v490 = vpop.f32.mrb[0].mxu0
      %v491 = vadd.f32 0.0, %v490
      %v492 = vpop.f32.mrb[0].mxu0
      %v493 = vpop.f32.mrb[0].mxu0
      %v494 = vadd.f32 0.0, %v493
      %v495 = vpop.f32.mrb[0].mxu0
      %496 = vmatprep.mubr.bf16.mxu0 0
      %497 = vmatmul.mubr.bf16.gmra.mrb[0].mxu0 %v438
      %v498 = vpop.f32.mrb[0].mxu0
      %v499 = vadd.f32 0.0, %v498
      %v500 = vpop.f32.mrb[0].mxu0
      %v501 = vpop.f32.mrb[0].mxu0
      %v502 = vadd.f32 0.0, %v501
      %v503 = vpop.f32.mrb[0].mxu0
      %504 = vdwg.mxu0
      %v505 = vmax.f32 %v475, 0.0
      %v506 = vmax.f32 %v478, 0.0
      %v507 = vmax.f32 %v483, 0.0
      %v508 = vmax.f32 %v486, 0.0
      %v509 = vmax.f32 %v491, 0.0
      %v510 = vmax.f32 %v494, 0.0
      %v511 = vmax.f32 %v499, 0.0
      %v512 = vmax.f32 %v502, 0.0
      %vm513 = vcmask 523264
      %v514 = vsel %vm513, %v505, 0.0
      %515 = vadd.xlane.f32.xlu0 %v514
      %v516 = vpop.xlane.xlu0 %515
      %v517 = vsel %vm513, %v506, 0.0
      %518 = vadd.xlane.f32.xlu0 %v517
      %v519 = vpop.xlane.xlu0 %518
      %v520 = vsel %vm513, %v507, 0.0
      %521 = vadd.xlane.f32.xlu0 %v520
      %v522 = vpop.xlane.xlu0 %521
      %v523 = vsel %vm513, %v508, 0.0
      %524 = vadd.xlane.f32.xlu0 %v523
      %v525 = vpop.xlane.xlu0 %524
      %v526 = vsel %vm513, %v509, 0.0
      %527 = vadd.xlane.f32.xlu0 %v526
      %v528 = vpop.xlane.xlu0 %527
      %v529 = vsel %vm513, %v510, 0.0
      %530 = vadd.xlane.f32.xlu0 %v529
      %v531 = vpop.xlane.xlu0 %530
      %v532 = vsel %vm513, %v511, 0.0
      %533 = vadd.xlane.f32.xlu0 %v532
      %v534 = vpop.xlane.xlu0 %533
      %v535 = vsel %vm513, %v512, 0.0
      %536 = vadd.xlane.f32.xlu0 %v535
      %v537 = vpop.xlane.xlu0 %536
      %v538 = vadd.f32 %v516, 0.0
      %v539 = vadd.f32 %v519, 0.0
      %v540 = vadd.f32 %v522, 0.0
      %v541 = vadd.f32 %v525, 0.0
      %v542 = vadd.f32 %v528, 0.0
      %v543 = vadd.f32 %v531, 0.0
      %v544 = vadd.f32 %v534, 0.0
      %v545 = vadd.f32 %v537, 0.0
      %v546 = vpack.c.bf16 %v506, %v505
      %v547 = vpack.c.bf16 %v508, %v507
      %v548 = vpack.c.bf16 %v510, %v509
      %v549 = vpack.c.bf16 %v512, %v511
      %v558 = vunpack.c.l.b16 %v201
      %v559 = vunpack.c.l.b16 %v202
      %v560 = vunpack.c.l.b16 %v203
      %v561 = vunpack.c.l.b16 %v204
      %v562 = vunpack.c.l.b16 %v205
      %v563 = vunpack.c.l.b16 %v206
      %v564 = vunpack.c.l.b16 %v207
      %v565 = vunpack.c.l.b16 %v208
      %v566 = vpack.c.b16 %v559, %v558
      %v567 = vpack.c.b16 %v561, %v560
      %v568 = vpack.c.b16 %v563, %v562
      %v569 = vpack.c.b16 %v565, %v564
      %v575 = vsel %vm513, %v546, 0
      %v578 = vsel %vm513, %v547, 0
      %v581 = vsel %vm513, %v548, 0
      %v584 = vsel %vm513, %v549, 0
      %586 = vmatprep.subr.bf16.mxu0 0
      %587 = vmatpush1.bf16.msra.mxu0 %v566
      %588 = vmatprep.subr.bf16.mxu0 0
      %589 = vmatpush1.bf16.msra.mxu0 %v567
      %590 = vmatprep.subr.bf16.mxu0 0
      %591 = vmatpush1.bf16.msra.mxu0 %v568
      %592 = vmatprep.subr.bf16.mxu0 0
      %593 = vmatpush1.bf16.msra.mxu0 %v569
      %594 = vmatprep.subr.bf16.mxu0 0
      %595 = vmatpush1.bf16.msra.mxu0 0
      %596 = vmatprep.subr.bf16.mxu0 0
      %597 = vmatpush1.bf16.msra.mxu0 0
      %598 = vmatprep.subr.bf16.mxu0 0
      %599 = vmatpush1.bf16.msra.mxu0 0
      %600 = vmatprep.subr.bf16.mxu0 0
      %601 = vmatpush1.bf16.msra.mxu0 0
      %602 = vmatprep.subr.bf16.mxu0 0
      %603 = vmatpush1.bf16.msra.mxu0 0
      %604 = vmatprep.subr.bf16.mxu0 0
      %605 = vmatpush1.bf16.msra.mxu0 0
      %606 = vmatprep.subr.bf16.mxu0 0
      %607 = vmatpush1.bf16.msra.mxu0 0
      %608 = vmatprep.subr.bf16.mxu0 0
      %609 = vmatpush1.bf16.msra.mxu0 0
      %610 = vmatprep.subr.bf16.mxu0 0
      %611 = vmatpush1.bf16.msra.mxu0 0
      %612 = vmatprep.subr.bf16.mxu0 0
      %613 = vmatpush1.bf16.msra.mxu0 0
      %614 = vmatprep.subr.bf16.mxu0 0
      %615 = vmatpush1.bf16.msra.mxu0 0
      %616 = vmatprep.subr.bf16.mxu0 0
      %617 = vmatpush1.bf16.msra.mxu0 0
      %618 = vmatprep.mubr.bf16.mxu0 0
      %619 = vmatmul.mubr.bf16.gmra.mrb[0].mxu0 %v575
      %v620 = vpop.f32.mrb[0].mxu0
      %v621 = vadd.f32 0.0, %v620
      %v622 = vpop.f32.mrb[0].mxu0
      %v623 = vpop.f32.mrb[0].mxu0
      %v624 = vadd.f32 0.0, %v623
      %v625 = vpop.f32.mrb[0].mxu0
      %626 = vmatprep.mubr.bf16.mxu0 0
      %627 = vmatmul.mubr.bf16.gmra.mrb[0].mxu0 %v578
      %v628 = vpop.f32.mrb[0].mxu0
      %v629 = vadd.f32 0.0, %v628
      %v630 = vpop.f32.mrb[0].mxu0
      %v631 = vpop.f32.mrb[0].mxu0
      %v632 = vadd.f32 0.0, %v631
      %v633 = vpop.f32.mrb[0].mxu0
      %634 = vmatprep.mubr.bf16.mxu0 0
      %635 = vmatmul.mubr.bf16.gmra.mrb[0].mxu0 %v581
      %v636 = vpop.f32.mrb[0].mxu0
      %v637 = vadd.f32 0.0, %v636
      %v638 = vpop.f32.mrb[0].mxu0
      %v639 = vpop.f32.mrb[0].mxu0
      %v640 = vadd.f32 0.0, %v639
      %v641 = vpop.f32.mrb[0].mxu0
      %642 = vmatprep.mubr.bf16.mxu0 0
      %643 = vmatmul.mubr.bf16.gmra.mrb[0].mxu0 %v584
      %v644 = vpop.f32.mrb[0].mxu0
      %v645 = vadd.f32 0.0, %v644
      %v646 = vpop.f32.mrb[0].mxu0
      %v647 = vpop.f32.mrb[0].mxu0
      %v648 = vadd.f32 0.0, %v647
      %v649 = vpop.f32.mrb[0].mxu0
      %650 = vdwg.mxu0
      %v651 = vadd.f32 %v538, 1e-06
      %v652 = vadd.f32 %v539, 1e-06
      %v653 = vadd.f32 %v540, 1e-06
      %v654 = vadd.f32 %v541, 1e-06
      %v655 = vadd.f32 %v542, 1e-06
      %v656 = vadd.f32 %v543, 1e-06
      %v657 = vadd.f32 %v544, 1e-06
      %v658 = vadd.f32 %v545, 1e-06
      %v659 = vrcp.pop %v651
      %v660 = vrcp.pop %v652
      %v661 = vrcp.pop %v653
      %v662 = vrcp.pop %v654
      %v663 = vrcp.pop %v655
      %v664 = vrcp.pop %v656
      %v665 = vrcp.pop %v657
      %v666 = vrcp.pop %v658
      %v667 = vmul.f32 %v621, %v659
      %v668 = vmul.f32 %v624, %v660
      %v669 = vmul.f32 %v629, %v661
      %v670 = vmul.f32 %v632, %v662
      %v671 = vmul.f32 %v637, %v663
      %v672 = vmul.f32 %v640, %v664
      %v673 = vmul.f32 %v645, %v665
      %v674 = vmul.f32 %v648, %v666
      %v675 = vpack.c.bf16 %v667, %v667
      %v676 = vpack.c.bf16 %v668, %v668
      %v677 = vpack.c.bf16 %v669, %v669
      %v678 = vpack.c.bf16 %v670, %v670
      %v679 = vpack.c.bf16 %v671, %v671
      %v680 = vpack.c.bf16 %v672, %v672
      %v681 = vpack.c.bf16 %v673, %v673
      %v682 = vpack.c.bf16 %v674, %v674
      %vm683 = vcmask 60416
      %684 = vst.msk [vmem:[%s190] sm:$0xf] %vm683, %v675
      %685 = vst.msk [vmem:[%s190 + $0x8] sm:$0xf] %vm683, %v676
      %686 = vst.msk [vmem:[%s190 + $0x10] sm:$0xf] %vm683, %v677
      %687 = vst.msk [vmem:[%s190 + $0x18] sm:$0xf] %vm683, %v678
      %688 = vst.msk [vmem:[%s190 + $0x20] sm:$0xf] %vm683, %v679
      %689 = vst.msk [vmem:[%s190 + $0x28] sm:$0xf] %vm683, %v680
      %690 = vst.msk [vmem:[%s190 + $0x30] sm:$0xf] %vm683, %v681
      %691 = vst.msk [vmem:[%s190 + $0x38] sm:$0xf] %vm683, %v682
      %v692 = vld [vmem:[%s180 + $0x4] sm:$0xf]
      %v693 = vld [vmem:[%s180 + $0xc] sm:$0xf]
      %v694 = vld [vmem:[%s180 + $0x14] sm:$0xf]
      %v695 = vld [vmem:[%s180 + $0x1c] sm:$0xf]
      %v696 = vld [vmem:[%s180 + $0x24] sm:$0xf]
      %v697 = vld [vmem:[%s180 + $0x2c] sm:$0xf]
      %v698 = vld [vmem:[%s180 + $0x34] sm:$0xf]
      %v699 = vld [vmem:[%s180 + $0x3c] sm:$0xf]
      %v700 = vld [vmem:[%s185 + $0x4] sm:$0xf]
      %v701 = vld [vmem:[%s185 + $0xc] sm:$0xf]
      %v702 = vld [vmem:[%s185 + $0x14] sm:$0xf]
      %v703 = vld [vmem:[%s185 + $0x1c] sm:$0xf]
      %v704 = vld [vmem:[%s185 + $0x24] sm:$0xf]
      %v705 = vld [vmem:[%s185 + $0x2c] sm:$0xf]
      %v706 = vld [vmem:[%s185 + $0x34] sm:$0xf]
      %v707 = vld [vmem:[%s185 + $0x3c] sm:$0xf]
      %v716 = vunpack.c.l.b16 %v692
      %v717 = vunpack.c.l.b16 %v693
      %v718 = vunpack.c.l.b16 %v694
      %v719 = vunpack.c.l.b16 %v695
      %v720 = vunpack.c.l.b16 %v696
      %v721 = vunpack.c.l.b16 %v697
      %v722 = vunpack.c.l.b16 %v698
      %v723 = vunpack.c.l.b16 %v699
      %v724 = vpack.c.b16 %v717, %v716
      %v725 = vpack.c.b16 %v719, %v718
      %v726 = vpack.c.b16 %v721, %v720
      %v727 = vpack.c.b16 %v723, %v722
      %v729 = vsel %vm229, %v724, 0
      %v732 = vsel %vm229, %v725, 0
      %v735 = vsel %vm229, %v726, 0
      %v738 = vsel %vm229, %v727, 0
      %740 = vmatprep.subr.bf16.mxu0 0
      %741 = vmatpush1.bf16.msra.mxu0 %v244
      %742 = vmatprep.subr.bf16.mxu0 0
      %743 = vmatpush1.bf16.msra.mxu0 0
      %744 = vmatprep.subr.bf16.mxu0 0
      %745 = vmatpush1.bf16.msra.mxu0 0
      %746 = vmatprep.subr.bf16.mxu0 0
      %747 = vmatpush1.bf16.msra.mxu0 0
      %748 = vmatprep.subr.bf16.mxu0 0
      %749 = vmatpush1.bf16.msra.mxu0 0
      %750 = vmatprep.subr.bf16.mxu0 0
      %751 = vmatpush1.bf16.msra.mxu0 0
      %752 = vmatprep.subr.bf16.mxu0 0
      %753 = vmatpush1.bf16.msra.mxu0 0
      %754 = vmatprep.subr.bf16.mxu0 0
      %755 = vmatpush1.bf16.msra.mxu0 0
      %756 = vmatprep.subr.bf16.mxu0 0
      %757 = vmatpush1.bf16.msra.mxu0 0
      %758 = vmatprep.subr.bf16.mxu0 0
      %759 = vmatpush1.bf16.msra.mxu0 0
      %760 = vmatprep.subr.bf16.mxu0 0
      %761 = vmatpush1.bf16.msra.mxu0 0
      %762 = vmatprep.subr.bf16.mxu0 0
      %763 = vmatpush1.bf16.msra.mxu0 0
      %764 = vmatprep.subr.bf16.mxu0 0
      %765 = vmatpush1.bf16.msra.mxu0 0
      %766 = vmatprep.subr.bf16.mxu0 0
      %767 = vmatpush1.bf16.msra.mxu0 0
      %768 = vmatprep.subr.bf16.mxu0 0
      %769 = vmatpush1.bf16.msra.mxu0 0
      %770 = vmatprep.subr.bf16.mxu0 0
      %771 = vmatpush1.bf16.msra.mxu0 0
      %772 = vmatprep.mubr.bf16.mxu0 0
      %773 = vmatmul.mubr.bf16.gmra.mrb[0].mxu0 %v729
      %v774 = vpop.f32.mrb[0].mxu0
      %v775 = vadd.f32 0.0, %v774
      %v776 = vpop.f32.mrb[0].mxu0
      %v777 = vpop.f32.mrb[0].mxu0
      %v778 = vadd.f32 0.0, %v777
      %v779 = vpop.f32.mrb[0].mxu0
      %780 = vmatprep.mubr.bf16.mxu0 0
      %781 = vmatmul.mubr.bf16.gmra.mrb[0].mxu0 %v732
      %v782 = vpop.f32.mrb[0].mxu0
      %v783 = vadd.f32 0.0, %v782
      %v784 = vpop.f32.mrb[0].mxu0
      %v785 = vpop.f32.mrb[0].mxu0
      %v786 = vadd.f32 0.0, %v785
      %v787 = vpop.f32.mrb[0].mxu0
      %788 = vmatprep.mubr.bf16.mxu0 0
      %789 = vmatmul.mubr.bf16.gmra.mrb[0].mxu0 %v735
      %v790 = vpop.f32.mrb[0].mxu0
      %v791 = vadd.f32 0.0, %v790
      %v792 = vpop.f32.mrb[0].mxu0
      %v793 = vpop.f32.mrb[0].mxu0
      %v794 = vadd.f32 0.0, %v793
      %v795 = vpop.f32.mrb[0].mxu0
      %796 = vmatprep.mubr.bf16.mxu0 0
      %797 = vmatmul.mubr.bf16.gmra.mrb[0].mxu0 %v738
      %v798 = vpop.f32.mrb[0].mxu0
      %v799 = vadd.f32 0.0, %v798
      %v800 = vpop.f32.mrb[0].mxu0
      %v801 = vpop.f32.mrb[0].mxu0
      %v802 = vadd.f32 0.0, %v801
      %v803 = vpop.f32.mrb[0].mxu0
      %804 = vdwg.mxu0
      %v805 = vmul.f32 %v775, %v775
      %v806 = vmul.f32 %v778, %v778
      %v807 = vmul.f32 %v783, %v783
      %v808 = vmul.f32 %v786, %v786
      %v809 = vmul.f32 %v791, %v791
      %v810 = vmul.f32 %v794, %v794
      %v811 = vmul.f32 %v799, %v799
      %v812 = vmul.f32 %v802, %v802
      %v813 = vsel %vm319, %v805, 0.0
      %814 = vadd.xlane.f32.xlu0 %v813
      %v815 = vpop.xlane.xlu0 %814
      %v816 = vsel %vm319, %v806, 0.0
      %817 = vadd.xlane.f32.xlu0 %v816
      %v818 = vpop.xlane.xlu0 %817
      %v819 = vsel %vm319, %v807, 0.0
      %820 = vadd.xlane.f32.xlu0 %v819
      %v821 = vpop.xlane.xlu0 %820
      %v822 = vsel %vm319, %v808, 0.0
      %823 = vadd.xlane.f32.xlu0 %v822
      %v824 = vpop.xlane.xlu0 %823
      %v825 = vsel %vm319, %v809, 0.0
      %826 = vadd.xlane.f32.xlu0 %v825
      %v827 = vpop.xlane.xlu0 %826
      %v828 = vsel %vm319, %v810, 0.0
      %829 = vadd.xlane.f32.xlu0 %v828
      %v830 = vpop.xlane.xlu0 %829
      %v831 = vsel %vm319, %v811, 0.0
      %832 = vadd.xlane.f32.xlu0 %v831
      %v833 = vpop.xlane.xlu0 %832
      %v834 = vsel %vm319, %v812, 0.0
      %835 = vadd.xlane.f32.xlu0 %v834
      %v836 = vpop.xlane.xlu0 %835
      %v837 = vrsqrt.pop %v815
      %v838 = vmul.f32 %v815, %v837
      %vm839 = vcmp.eq.f32.partialorder %v815, inf
      %v840 = vsel %vm839, %v815, %v838
      %vm841 = vcmp.eq.f32.partialorder %v815, 0.0
      %v842 = vand.u32 %v815, 2147483648
      %v843 = vsel %vm841, %v842, %v840
      %v844 = vrsqrt.pop %v818
      %v845 = vmul.f32 %v818, %v844
      %vm846 = vcmp.eq.f32.partialorder %v818, inf
      %v847 = vsel %vm846, %v818, %v845
      %vm848 = vcmp.eq.f32.partialorder %v818, 0.0
      %v849 = vand.u32 %v818, 2147483648
      %v850 = vsel %vm848, %v849, %v847
      %v851 = vrsqrt.pop %v821
      %v852 = vmul.f32 %v821, %v851
      %vm853 = vcmp.eq.f32.partialorder %v821, inf
      %v854 = vsel %vm853, %v821, %v852
      %vm855 = vcmp.eq.f32.partialorder %v821, 0.0
      %v856 = vand.u32 %v821, 2147483648
      %v857 = vsel %vm855, %v856, %v854
      %v858 = vrsqrt.pop %v824
      %v859 = vmul.f32 %v824, %v858
      %vm860 = vcmp.eq.f32.partialorder %v824, inf
      %v861 = vsel %vm860, %v824, %v859
      %vm862 = vcmp.eq.f32.partialorder %v824, 0.0
      %v863 = vand.u32 %v824, 2147483648
      %v864 = vsel %vm862, %v863, %v861
      %v865 = vrsqrt.pop %v827
      %v866 = vmul.f32 %v827, %v865
      %vm867 = vcmp.eq.f32.partialorder %v827, inf
      %v868 = vsel %vm867, %v827, %v866
      %vm869 = vcmp.eq.f32.partialorder %v827, 0.0
      %v870 = vand.u32 %v827, 2147483648
      %v871 = vsel %vm869, %v870, %v868
      %v872 = vrsqrt.pop %v830
      %v873 = vmul.f32 %v830, %v872
      %vm874 = vcmp.eq.f32.partialorder %v830, inf
      %v875 = vsel %vm874, %v830, %v873
      %vm876 = vcmp.eq.f32.partialorder %v830, 0.0
      %v877 = vand.u32 %v830, 2147483648
      %v878 = vsel %vm876, %v877, %v875
      %v879 = vrsqrt.pop %v833
      %v880 = vmul.f32 %v833, %v879
      %vm881 = vcmp.eq.f32.partialorder %v833, inf
      %v882 = vsel %vm881, %v833, %v880
      %vm883 = vcmp.eq.f32.partialorder %v833, 0.0
      %v884 = vand.u32 %v833, 2147483648
      %v885 = vsel %vm883, %v884, %v882
      %v886 = vrsqrt.pop %v836
      %v887 = vmul.f32 %v836, %v886
      %vm888 = vcmp.eq.f32.partialorder %v836, inf
      %v889 = vsel %vm888, %v836, %v887
      %vm890 = vcmp.eq.f32.partialorder %v836, 0.0
      %v891 = vand.u32 %v836, 2147483648
      %v892 = vsel %vm890, %v891, %v889
      %v893 = vadd.f32 %v843, 1e-06
      %v894 = vadd.f32 %v850, 1e-06
      %v895 = vadd.f32 %v857, 1e-06
      %v896 = vadd.f32 %v864, 1e-06
      %v897 = vadd.f32 %v871, 1e-06
      %v898 = vadd.f32 %v878, 1e-06
      %v899 = vadd.f32 %v885, 1e-06
      %v900 = vadd.f32 %v892, 1e-06
      %v901 = vrcp.pop %v893
      %v902 = vrcp.pop %v894
      %v903 = vrcp.pop %v895
      %v904 = vrcp.pop %v896
      %v905 = vrcp.pop %v897
      %v906 = vrcp.pop %v898
      %v907 = vrcp.pop %v899
      %v908 = vrcp.pop %v900
      %v909 = vmul.f32 %v775, %v901
      %v910 = vmul.f32 %v778, %v902
      %v911 = vmul.f32 %v783, %v903
      %v912 = vmul.f32 %v786, %v904
      %v913 = vmul.f32 %v791, %v905
      %v914 = vmul.f32 %v794, %v906
      %v915 = vmul.f32 %v799, %v907
      %v916 = vmul.f32 %v802, %v908
      %v917 = vpack.c.bf16 %v910, %v909
      %v918 = vpack.c.bf16 %v912, %v911
      %v919 = vpack.c.bf16 %v914, %v913
      %v920 = vpack.c.bf16 %v916, %v915
      %v922 = vsel %vm319, %v917, 0
      %v925 = vsel %vm319, %v918, 0
      %v928 = vsel %vm319, %v919, 0
      %v931 = vsel %vm319, %v920, 0
      %933 = vmatprep.subr.bf16.mxu0 0
      %934 = vmatpush1.bf16.xpose.msra.mxu0 %v922
      %935 = vmatprep.subr.bf16.mxu0 0
      %936 = vmatpush1.bf16.xpose.msra.mxu0 %v925
      %937 = vmatprep.subr.bf16.mxu0 0
      %938 = vmatpush1.bf16.xpose.msra.mxu0 %v928
      %939 = vmatprep.subr.bf16.mxu0 0
      %940 = vmatpush1.bf16.xpose.msra.mxu0 %v931
      %941 = vmatprep.subr.bf16.mxu0 0
      %942 = vmatpush1.bf16.xpose.msra.mxu0 0
      %943 = vmatprep.subr.bf16.mxu0 0
      %944 = vmatpush1.bf16.xpose.msra.mxu0 0
      %945 = vmatprep.subr.bf16.mxu0 0
      %946 = vmatpush1.bf16.xpose.msra.mxu0 0
      %947 = vmatprep.subr.bf16.mxu0 0
      %948 = vmatpush1.bf16.xpose.msra.mxu0 0
      %949 = vmatprep.subr.bf16.mxu0 0
      %950 = vmatpush1.bf16.xpose.msra.mxu0 0
      %951 = vmatprep.subr.bf16.mxu0 0
      %952 = vmatpush1.bf16.xpose.msra.mxu0 0
      %953 = vmatprep.subr.bf16.mxu0 0
      %954 = vmatpush1.bf16.xpose.msra.mxu0 0
      %955 = vmatprep.subr.bf16.mxu0 0
      %956 = vmatpush1.bf16.xpose.msra.mxu0 0
      %957 = vmatprep.subr.bf16.mxu0 0
      %958 = vmatpush1.bf16.xpose.msra.mxu0 0
      %959 = vmatprep.subr.bf16.mxu0 0
      %960 = vmatpush1.bf16.xpose.msra.mxu0 0
      %961 = vmatprep.subr.bf16.mxu0 0
      %962 = vmatpush1.bf16.xpose.msra.mxu0 0
      %963 = vmatprep.subr.bf16.mxu0 0
      %964 = vmatpush1.bf16.xpose.msra.mxu0 0
      %965 = vmatprep.mubr.bf16.mxu0 0
      %966 = vmatmul.mubr.bf16.gmra.mrb[0].mxu0 %v922
      %v967 = vpop.f32.mrb[0].mxu0
      %v968 = vadd.f32 0.0, %v967
      %v969 = vpop.f32.mrb[0].mxu0
      %v970 = vpop.f32.mrb[0].mxu0
      %v971 = vadd.f32 0.0, %v970
      %v972 = vpop.f32.mrb[0].mxu0
      %973 = vmatprep.mubr.bf16.mxu0 0
      %974 = vmatmul.mubr.bf16.gmra.mrb[0].mxu0 %v925
      %v975 = vpop.f32.mrb[0].mxu0
      %v976 = vadd.f32 0.0, %v975
      %v977 = vpop.f32.mrb[0].mxu0
      %v978 = vpop.f32.mrb[0].mxu0
      %v979 = vadd.f32 0.0, %v978
      %v980 = vpop.f32.mrb[0].mxu0
      %981 = vmatprep.mubr.bf16.mxu0 0
      %982 = vmatmul.mubr.bf16.gmra.mrb[0].mxu0 %v928
      %v983 = vpop.f32.mrb[0].mxu0
      %v984 = vadd.f32 0.0, %v983
      %v985 = vpop.f32.mrb[0].mxu0
      %v986 = vpop.f32.mrb[0].mxu0
      %v987 = vadd.f32 0.0, %v986
      %v988 = vpop.f32.mrb[0].mxu0
      %989 = vmatprep.mubr.bf16.mxu0 0
      %990 = vmatmul.mubr.bf16.gmra.mrb[0].mxu0 %v931
      %v991 = vpop.f32.mrb[0].mxu0
      %v992 = vadd.f32 0.0, %v991
      %v993 = vpop.f32.mrb[0].mxu0
      %v994 = vpop.f32.mrb[0].mxu0
      %v995 = vadd.f32 0.0, %v994
      %v996 = vpop.f32.mrb[0].mxu0
      %997 = vdwg.mxu0
      %v998 = vmax.f32 %v968, 0.0
      %v999 = vmax.f32 %v971, 0.0
      %v1000 = vmax.f32 %v976, 0.0
      %v1001 = vmax.f32 %v979, 0.0
      %v1002 = vmax.f32 %v984, 0.0
      %v1003 = vmax.f32 %v987, 0.0
      %v1004 = vmax.f32 %v992, 0.0
      %v1005 = vmax.f32 %v995, 0.0
      %v1006 = vsel %vm513, %v998, 0.0
      %1007 = vadd.xlane.f32.xlu0 %v1006
      %v1008 = vpop.xlane.xlu0 %1007
      %v1009 = vsel %vm513, %v999, 0.0
      %1010 = vadd.xlane.f32.xlu0 %v1009
      %v1011 = vpop.xlane.xlu0 %1010
      %v1012 = vsel %vm513, %v1000, 0.0
      %1013 = vadd.xlane.f32.xlu0 %v1012
      %v1014 = vpop.xlane.xlu0 %1013
      %v1015 = vsel %vm513, %v1001, 0.0
      %1016 = vadd.xlane.f32.xlu0 %v1015
      %v1017 = vpop.xlane.xlu0 %1016
      %v1018 = vsel %vm513, %v1002, 0.0
      %1019 = vadd.xlane.f32.xlu0 %v1018
      %v1020 = vpop.xlane.xlu0 %1019
      %v1021 = vsel %vm513, %v1003, 0.0
      %1022 = vadd.xlane.f32.xlu0 %v1021
      %v1023 = vpop.xlane.xlu0 %1022
      %v1024 = vsel %vm513, %v1004, 0.0
      %1025 = vadd.xlane.f32.xlu0 %v1024
      %v1026 = vpop.xlane.xlu0 %1025
      %v1027 = vsel %vm513, %v1005, 0.0
      %1028 = vadd.xlane.f32.xlu0 %v1027
      %v1029 = vpop.xlane.xlu0 %1028
      %v1030 = vadd.f32 %v1008, 0.0
      %v1031 = vadd.f32 %v1011, 0.0
      %v1032 = vadd.f32 %v1014, 0.0
      %v1033 = vadd.f32 %v1017, 0.0
      %v1034 = vadd.f32 %v1020, 0.0
      %v1035 = vadd.f32 %v1023, 0.0
      %v1036 = vadd.f32 %v1026, 0.0
      %v1037 = vadd.f32 %v1029, 0.0
      %v1038 = vpack.c.bf16 %v999, %v998
      %v1039 = vpack.c.bf16 %v1001, %v1000
      %v1040 = vpack.c.bf16 %v1003, %v1002
      %v1041 = vpack.c.bf16 %v1005, %v1004
      %v1050 = vunpack.c.l.b16 %v700
      %v1051 = vunpack.c.l.b16 %v701
      %v1052 = vunpack.c.l.b16 %v702
      %v1053 = vunpack.c.l.b16 %v703
      %v1054 = vunpack.c.l.b16 %v704
      %v1055 = vunpack.c.l.b16 %v705
      %v1056 = vunpack.c.l.b16 %v706
      %v1057 = vunpack.c.l.b16 %v707
      %v1058 = vpack.c.b16 %v1051, %v1050
      %v1059 = vpack.c.b16 %v1053, %v1052
      %v1060 = vpack.c.b16 %v1055, %v1054
      %v1061 = vpack.c.b16 %v1057, %v1056
      %v1067 = vsel %vm513, %v1038, 0
      %v1070 = vsel %vm513, %v1039, 0
      %v1073 = vsel %vm513, %v1040, 0
      %v1076 = vsel %vm513, %v1041, 0
      %1078 = vmatprep.subr.bf16.mxu0 0
      %1079 = vmatpush1.bf16.msra.mxu0 %v1058
      %1080 = vmatprep.subr.bf16.mxu0 0
      %1081 = vmatpush1.bf16.msra.mxu0 %v1059
      %1082 = vmatprep.subr.bf16.mxu0 0
      %1083 = vmatpush1.bf16.msra.mxu0 %v1060
      %1084 = vmatprep.subr.bf16.mxu0 0
      %1085 = vmatpush1.bf16.msra.mxu0 %v1061
      %1086 = vmatprep.subr.bf16.mxu0 0
      %1087 = vmatpush1.bf16.msra.mxu0 0
      %1088 = vmatprep.subr.bf16.mxu0 0
      %1089 = vmatpush1.bf16.msra.mxu0 0
      %1090 = vmatprep.subr.bf16.mxu0 0
      %1091 = vmatpush1.bf16.msra.mxu0 0
      %1092 = vmatprep.subr.bf16.mxu0 0
      %1093 = vmatpush1.bf16.msra.mxu0 0
      %1094 = vmatprep.subr.bf16.mxu0 0
      %1095 = vmatpush1.bf16.msra.mxu0 0
      %1096 = vmatprep.subr.bf16.mxu0 0
      %1097 = vmatpush1.bf16.msra.mxu0 0
      %1098 = vmatprep.subr.bf16.mxu0 0
      %1099 = vmatpush1.bf16.msra.mxu0 0
      %1100 = vmatprep.subr.bf16.mxu0 0
      %1101 = vmatpush1.bf16.msra.mxu0 0
      %1102 = vmatprep.subr.bf16.mxu0 0
      %1103 = vmatpush1.bf16.msra.mxu0 0
      %1104 = vmatprep.subr.bf16.mxu0 0
      %1105 = vmatpush1.bf16.msra.mxu0 0
      %1106 = vmatprep.subr.bf16.mxu0 0
      %1107 = vmatpush1.bf16.msra.mxu0 0
      %1108 = vmatprep.subr.bf16.mxu0 0
      %1109 = vmatpush1.bf16.msra.mxu0 0
      %1110 = vmatprep.mubr.bf16.mxu0 0
      %1111 = vmatmul.mubr.bf16.gmra.mrb[0].mxu0 %v1067
      %v1112 = vpop.f32.mrb[0].mxu0
      %v1113 = vadd.f32 0.0, %v1112
      %v1114 = vpop.f32.mrb[0].mxu0
      %v1115 = vpop.f32.mrb[0].mxu0
      %v1116 = vadd.f32 0.0, %v1115
      %v1117 = vpop.f32.mrb[0].mxu0
      %1118 = vmatprep.mubr.bf16.mxu0 0
      %1119 = vmatmul.mubr.bf16.gmra.mrb[0].mxu0 %v1070
      %v1120 = vpop.f32.mrb[0].mxu0
      %v1121 = vadd.f32 0.0, %v1120
      %v1122 = vpop.f32.mrb[0].mxu0
      %v1123 = vpop.f32.mrb[0].mxu0
      %v1124 = vadd.f32 0.0, %v1123
      %v1125 = vpop.f32.mrb[0].mxu0
      %1126 = vmatprep.mubr.bf16.mxu0 0
      %1127 = vmatmul.mubr.bf16.gmra.mrb[0].mxu0 %v1073
      %v1128 = vpop.f32.mrb[0].mxu0
      %v1129 = vadd.f32 0.0, %v1128
      %v1130 = vpop.f32.mrb[0].mxu0
      %v1131 = vpop.f32.mrb[0].mxu0
      %v1132 = vadd.f32 0.0, %v1131
      %v1133 = vpop.f32.mrb[0].mxu0
      %1134 = vmatprep.mubr.bf16.mxu0 0
      %1135 = vmatmul.mubr.bf16.gmra.mrb[0].mxu0 %v1076
      %v1136 = vpop.f32.mrb[0].mxu0
      %v1137 = vadd.f32 0.0, %v1136
      %v1138 = vpop.f32.mrb[0].mxu0
      %v1139 = vpop.f32.mrb[0].mxu0
      %v1140 = vadd.f32 0.0, %v1139
      %v1141 = vpop.f32.mrb[0].mxu0
      %1142 = vdwg.mxu0
      %v1143 = vadd.f32 %v1030, 1e-06
      %v1144 = vadd.f32 %v1031, 1e-06
      %v1145 = vadd.f32 %v1032, 1e-06
      %v1146 = vadd.f32 %v1033, 1e-06
      %v1147 = vadd.f32 %v1034, 1e-06
      %v1148 = vadd.f32 %v1035, 1e-06
      %v1149 = vadd.f32 %v1036, 1e-06
      %v1150 = vadd.f32 %v1037, 1e-06
      %v1151 = vrcp.pop %v1143
      %v1152 = vrcp.pop %v1144
      %v1153 = vrcp.pop %v1145
      %v1154 = vrcp.pop %v1146
      %v1155 = vrcp.pop %v1147
      %v1156 = vrcp.pop %v1148
      %v1157 = vrcp.pop %v1149
      %v1158 = vrcp.pop %v1150
      %v1159 = vmul.f32 %v1113, %v1151
      %v1160 = vmul.f32 %v1116, %v1152
      %v1161 = vmul.f32 %v1121, %v1153
      %v1162 = vmul.f32 %v1124, %v1154
      %v1163 = vmul.f32 %v1129, %v1155
      %v1164 = vmul.f32 %v1132, %v1156
      %v1165 = vmul.f32 %v1137, %v1157
      %v1166 = vmul.f32 %v1140, %v1158
      %v1167 = vpack.c.bf16 %v1159, %v1159
      %v1168 = vpack.c.bf16 %v1160, %v1160
      %v1169 = vpack.c.bf16 %v1161, %v1161
      %v1170 = vpack.c.bf16 %v1162, %v1162
      %v1171 = vpack.c.bf16 %v1163, %v1163
      %v1172 = vpack.c.bf16 %v1164, %v1164
      %v1173 = vpack.c.bf16 %v1165, %v1165
      %v1174 = vpack.c.bf16 %v1166, %v1166
      %1175 = vst.msk [vmem:[%s190 + $0x4] sm:$0xf] %vm683, %v1167
      %1176 = vst.msk [vmem:[%s190 + $0xc] sm:$0xf] %vm683, %v1168
      %1177 = vst.msk [vmem:[%s190 + $0x14] sm:$0xf] %vm683, %v1169
      %1178 = vst.msk [vmem:[%s190 + $0x1c] sm:$0xf] %vm683, %v1170
      %1179 = vst.msk [vmem:[%s190 + $0x24] sm:$0xf] %vm683, %v1171
      %1180 = vst.msk [vmem:[%s190 + $0x2c] sm:$0xf] %vm683, %v1172
      %1181 = vst.msk [vmem:[%s190 + $0x34] sm:$0xf] %vm683, %v1173
      %1182 = vst.msk [vmem:[%s190 + $0x3c] sm:$0xf] %vm683, %v1174
      %p1183 = scmp.lt.s32.totalorder %s14, 3
      %s1184 = scalar_select %p1183, %s14, 3
      %s1185 = smul.addr %s1184, 16
      %s1186 = smul.addr %s1185, 4
      %s1187 = scalar_lea.vmem %s3, %s1186
      // Predicated region
      $region33: #{pcm_forward.1} parent=31 // pred_check
        %p1188 = pneg %p105
      $region34: #{pcm_forward.1} parent=31 // pred_check_branch
        %1190 = sbr.rel (%p1188) target = $region36
      $region35: #{pcm_forward.1} parent=31 // pred_region
        _
      $region36: #{pcm_forward.1} parent=31 // pred_fallthru
        _
    $region32: #{pcm_forward.1} parent=5 // pred_fallthru
      _
    %p1191 = scmp.le.s32.totalorder 2, %s9
    // Predicated region
    $region37: #{pcm_forward.1} parent=5 // pred_check
      %p1192 = pneg %p1191
    $region38: #{pcm_forward.1} parent=5 // pred_check_branch
      %1194 = sbr.rel (%p1192) target = $region40
    $region39: #{pcm_forward.1} parent=5 // pred_region
      %s1195 = ssub.s32 %s9, 2
      // Predicated region
      $region41: #{pcm_forward.1} parent=39 // pred_check
        %p1196 = pneg %p111
      $region42: #{pcm_forward.1} parent=39 // pred_check_branch
        %1198 = sbr.rel (%p1196) target = $region44
      $region43: #{pcm_forward.1} parent=39 // pred_region
        %p1199 = scmp.lt.s32.totalorder %s15, 3
        %s1200 = scalar_select %p1199, %s15, 3
        %s1201 = smul.addr %s1200, 16
        %s1202 = smul.addr %s1201, 4
        %s1203 = scalar_lea.vmem %s3, %s1202
      $region44: #{pcm_forward.1} parent=39 // pred_fallthru
        _
    $region40: #{pcm_forward.1} parent=5 // pred_fallthru
      _
  $region6: #{pcm_forward.1} parent=0 // loop_footer
    %s13 = sadd.s32 1, %s9
  $region7: #{pcm_forward.1} parent=0 // loop_footer_branch
    %8 = sbr.rel target = $region3
  $region8: #{pcm_forward.1} parent=0 // loop_exit
    _

</llo_original>
